<compile_context>
chip_gen: v5e
topology: v5e:2x2
jax: 0.10.0
libtpu: 0.0.40
codegen_flags: <defaults>
</compile_context>

<pallas_src>
import jax
import jax.numpy as jnp
from jax.experimental import pallas as pl
from jax.experimental.pallas import tpu as pltpu


def _round_up(x, m):
    return ((x + m - 1) // m) * m


def _fusion_kernel(w_ref, *refs):
    """Weighted sum over models of same-shaped logit tiles.

    w_ref:     SMEM f32 ref of shape (num_models,) - fusion weights.
    refs[:-1]: VMEM input tiles, one per model, shape (tile_bs, tile_v),
               native dtype (e.g. bf16).
    refs[-1]:  VMEM output tile, shape (tile_bs, tile_v).
    """
    out_ref = refs[-1]
    in_refs = refs[:-1]
    # Initialize the accumulator with the first term (no zeros materialization),
    # then a short unrolled VPU fma chain over the remaining models.
    acc = in_refs[0][...].astype(jnp.float32) * w_ref[0]
    for m in range(1, len(in_refs)):
        acc = acc + in_refs[m][...].astype(jnp.float32) * w_ref[m]
    out_ref[...] = acc.astype(out_ref.dtype)


def _vmem_capacity_bytes():
    """Per-core VMEM capacity; conservative fallback if the query fails."""
    try:
        return int(pltpu.get_tpu_info().vmem_capacity_bytes)
    except Exception:
        return 64 * 1024 * 1024  # v7x per-TensorCore size (the smallest case)


def _choose_tiles(bs, min_vocab, num_models, in_bytes, out_bytes, budget_bytes):
    """Pick (tile_bs, tile_v) for a double-buffered pipeline footprint
    (num_models inputs + 1 output, 2 buffers each) within `budget_bytes`.

    Priority: maximize tile_v (the contiguous lane dim) first for long HBM
    bursts, then grow tile_bs.  Tiles need not divide the array dims; the
    grid uses pl.cdiv and Pallas masks the ragged boundary blocks.
    """
    v_pad = _round_up(min_vocab, 128)
    per_elem = 2 * (num_models * in_bytes + out_bytes)  # double-buffered B/elem

    min_rows = bs if bs < 8 else 8

    # 1) Widest lane tile that fits with the minimal row tile.
    tile_v = v_pad
    while tile_v > 128 and min_rows * tile_v * per_elem > budget_bytes:
        tile_v = _round_up(max(128, tile_v // 2), 128)
    tile_v = min(tile_v, v_pad)

    # 2) Largest row tile (multiple of 8, or full bs for tiny batches) that
    #    still fits together with that lane tile.
    if bs < 8:
        row_cands = [bs]
    else:
        row_cands = [r for r in (1024, 512, 256, 128, 64, 32, 16, 8)
                     if r <= _round_up(bs, 8)] or [8]
    tile_bs = row_cands[-1]
    for r in row_cands:
        if r * tile_v * per_elem <= budget_bytes:
            tile_bs = r
            break

    return tile_bs, tile_v


def fuse_logits(logits_list, weights, *, out_dtype=jnp.float32):
    """Reproduces FusionModel.__call__ logits fusion.

    logits_list: list of arrays, each [B, S, V_m] (possibly differing V_m and
                 dtype; kept in their native dtype in HBM).
    weights:     per-model scalar weights (python list/tuple or jnp array,
                 may be traced under jit), length num_models.

    Returns fused logits [B, S, min_vocab_size] in `out_dtype` (f32 default,
    matching the PyTorch semantics; pass bfloat16 to halve output traffic).
    """
    num_models = len(logits_list)
    assert num_models > 0
    assert len(weights) == num_models

    B, S = logits_list[0].shape[:2]
    for l in logits_list:
        assert l.shape[:2] == (B, S)
    min_vocab = min(int(l.shape[-1]) for l in logits_list)
    BS = B * S

    # (B, S, V_m) -> (BS, V_m): contiguous reshape, no extra HBM copy.
    flat = [l.reshape(BS, l.shape[-1]) for l in logits_list]
    w = jnp.asarray(weights, dtype=jnp.float32)

    in_bytes = max(jnp.dtype(l.dtype).itemsize for l in flat)
    out_bytes = jnp.dtype(out_dtype).itemsize

    vmem_cap = _vmem_capacity_bytes()
    budget = min(64 * 1024 * 1024, vmem_cap // 2)  # ~32 MiB on v7x, 64 MiB on v5e/v6e
    tile_bs, tile_v = _choose_tiles(
        BS, min_vocab, num_models, in_bytes, out_bytes, budget
    )
    grid = (pl.cdiv(BS, tile_bs), pl.cdiv(min_vocab, tile_v))

    # VMEM limit derived from the actual double-buffered footprint (+ margin),
    # never exceeding (most of) the physical per-core capacity.
    footprint = 2 * tile_bs * tile_v * (num_models * in_bytes + out_bytes)
    vmem_limit = max(16 * 1024 * 1024,
                     min(int(vmem_cap * 0.9), footprint + 4 * 1024 * 1024))

    # Advisory cost: lets XLA overlap this mem-bound fusion with the
    # surrounding per-model forward passes in the generate loop.
    bytes_accessed = (
        sum(BS * min_vocab * jnp.dtype(l.dtype).itemsize for l in flat)
        + BS * min_vocab * out_bytes
        + num_models * 4
    )
    cost = pl.CostEstimate(
        flops=(2 * num_models - 1) * BS * min_vocab,
        transcendentals=0,
        bytes_accessed=bytes_accessed,
    )

    # One BlockSpec per model: the DMA window itself performs the vocab
    # truncation; boundary blocks past a model's own vocab (or past
    # min_vocab) are padded on read and masked on the output store.
    in_specs = [pl.BlockSpec(memory_space=pltpu.MemorySpace.SMEM)] + [
        pl.BlockSpec((tile_bs, tile_v), lambda i, j: (i, j)) for _ in flat
    ]
    out_specs = pl.BlockSpec((tile_bs, tile_v), lambda i, j: (i, j))

    fused = pl.pallas_call(
        _fusion_kernel,
        out_shape=jax.ShapeDtypeStruct((BS, min_vocab), out_dtype),
        grid=grid,
        in_specs=in_specs,
        out_specs=out_specs,
        compiler_params=pltpu.CompilerParams(
            dimension_semantics=("parallel", "parallel"),
            vmem_limit_bytes=vmem_limit,
        ),
        cost_estimate=cost,
    )(w, *flat)

    return fused.reshape(B, S, min_vocab)


if __name__ == "__main__":
    key = jax.random.PRNGKey(0)

    def reference(logits_list, weights):
        min_v = min(int(l.shape[-1]) for l in logits_list)
        return sum(
            jnp.float32(w) * l[:, :, :min_v].astype(jnp.float32)
            for w, l in zip(weights, logits_list)
        )

    # Case 1: bf16 logits in HBM (native dtype), 128-aligned min vocab.
    num_models = 3
    B, S = 2, 8
    vocab_sizes = [384, 256, 320]  # min vocab = 256
    weights = [0.5, 0.3, 0.2]
    keys = jax.random.split(key, num_models + 1)
    logits_list = [
        jax.random.normal(
            keys[m], (B, S, vocab_sizes[m]), dtype=jnp.float32
        ).astype(jnp.bfloat16)
        for m in range(num_models)
    ]
    fused = jax.block_until_ready(fuse_logits(logits_list, weights))
    ref = reference(logits_list, weights)
    assert fused.shape == (B, S, min(vocab_sizes))
    assert jnp.allclose(fused, ref, atol=1e-4, rtol=1e-4)

    # Case 2: f32 logits, non-128-aligned min vocab (exercises the masked
    # ragged output block and boundary-padded input reads).
    vocab_sizes2 = [100, 90, 120]  # min vocab = 90
    weights2 = [0.25, 0.5, 0.25]
    B2, S2 = 2, 4
    keys2 = jax.random.split(keys[-1], len(vocab_sizes2))
    logits_list2 = [
        jax.random.normal(keys2[m], (B2, S2, vocab_sizes2[m]), dtype=jnp.float32)
        for m in range(len(vocab_sizes2))
    ]
    fused2 = jax.block_until_ready(fuse_logits(logits_list2, weights2))
    ref2 = reference(logits_list2, weights2)
    assert fused2.shape == (B2, S2, min(vocab_sizes2))
    assert jnp.allclose(fused2, ref2, atol=1e-5, rtol=1e-5)

    # Case 3: weights as a traced jnp array under jit (no recompile per value,
    # no ConcretizationTypeError) - weights live in SMEM, not baked into code.
    w3 = jnp.asarray([0.2, 0.3, 0.5], dtype=jnp.float32)
    fused3 = jax.block_until_ready(
        jax.jit(lambda ws: fuse_logits(logits_list, ws))(w3)
    )
    ref3 = reference(logits_list, [0.2, 0.3, 0.5])
    assert jnp.allclose(fused3, ref3, atol=1e-4, rtol=1e-4)

    print("KERNEL_OK")
</pallas_src>

<mosaic_0001>
module attributes {stable_mosaic.version = 11 : i64} {
  func.func @_fusion_kernel(%arg0: i32, %arg1: i32, %arg2: memref<3xf32, #tpu.memory_space<smem>>, %arg3: memref<16x256xbf16, #tpu.memory_space<vmem>>, %arg4: memref<16x256xbf16, #tpu.memory_space<vmem>>, %arg5: memref<16x256xbf16, #tpu.memory_space<vmem>>, %arg6: memref<16x256xf32, #tpu.memory_space<vmem>>) attributes {dimension_semantics = [#tpu.dimension_semantics<parallel>, #tpu.dimension_semantics<parallel>], iteration_bounds = array<i64: 1, 1>, scalar_prefetch = 0 : i64, scratch_operands = 0 : i64, tpu.core_type = #tpu.core_type<tc>, window_params = [{transform_indices = @transform_0, window_bounds = array<i64: 3>}, {transform_indices = @transform_1, window_bounds = array<i64: 16, 256>}, {transform_indices = @transform_2, window_bounds = array<i64: 16, 256>}, {transform_indices = @transform_3, window_bounds = array<i64: 16, 256>}, {transform_indices = @transform_4, window_bounds = array<i64: 16, 256>}]} {
    %c0 = arith.constant 0 : index
    %c0_0 = arith.constant 0 : index
    %0 = vector.load %arg3[%c0, %c0_0] : memref<16x256xbf16, #tpu.memory_space<vmem>>, vector<16x256xbf16>
    %1 = arith.extf %0 : vector<16x256xbf16> to vector<16x256xf32>
    %c0_1 = arith.constant 0 : index
    %2 = memref.load %arg2[%c0_1] : memref<3xf32, #tpu.memory_space<smem>>
    %3 = vector.broadcast %2 : f32 to vector<16x256xf32>
    %4 = arith.mulf %1, %3 : vector<16x256xf32>
    %c0_2 = arith.constant 0 : index
    %c0_3 = arith.constant 0 : index
    %5 = vector.load %arg4[%c0_2, %c0_3] : memref<16x256xbf16, #tpu.memory_space<vmem>>, vector<16x256xbf16>
    %6 = arith.extf %5 : vector<16x256xbf16> to vector<16x256xf32>
    %c1 = arith.constant 1 : index
    %7 = memref.load %arg2[%c1] : memref<3xf32, #tpu.memory_space<smem>>
    %8 = vector.broadcast %7 : f32 to vector<16x256xf32>
    %9 = arith.mulf %6, %8 : vector<16x256xf32>
    %10 = arith.addf %4, %9 : vector<16x256xf32>
    %c0_4 = arith.constant 0 : index
    %c0_5 = arith.constant 0 : index
    %11 = vector.load %arg5[%c0_4, %c0_5] : memref<16x256xbf16, #tpu.memory_space<vmem>>, vector<16x256xbf16>
    %12 = arith.extf %11 : vector<16x256xbf16> to vector<16x256xf32>
    %c2 = arith.constant 2 : index
    %13 = memref.load %arg2[%c2] : memref<3xf32, #tpu.memory_space<smem>>
    %14 = vector.broadcast %13 : f32 to vector<16x256xf32>
    %15 = arith.mulf %12, %14 : vector<16x256xf32>
    %16 = arith.addf %10, %15 : vector<16x256xf32>
    %c0_6 = arith.constant 0 : index
    %c0_7 = arith.constant 0 : index
    %17 = vector.load %arg6[%c0_6, %c0_7] : memref<16x256xf32, #tpu.memory_space<vmem>>, vector<16x256xf32>
    tpu.vector_store %arg6[%c0_6, %c0_7], %16 {strides = array<i32>} : memref<16x256xf32, #tpu.memory_space<vmem>>, vector<16x256xf32>,
    return
  }
  func.func @transform_0(%arg0: i32, %arg1: i32) -> i32 {
    %c0_i32 = arith.constant 0 : i32
    %c0_i32_0 = arith.constant 0 : i32
    return %c0_i32 : i32
  }
  func.func @transform_1(%arg0: i32, %arg1: i32) -> (i32, i32) {
    %c0_i32 = arith.constant 0 : i32
    return %arg0, %arg1 : i32, i32
  }
  func.func @transform_2(%arg0: i32, %arg1: i32) -> (i32, i32) {
    %c0_i32 = arith.constant 0 : i32
    return %arg0, %arg1 : i32, i32
  }
  func.func @transform_3(%arg0: i32, %arg1: i32) -> (i32, i32) {
    %c0_i32 = arith.constant 0 : i32
    return %arg0, %arg1 : i32, i32
  }
  func.func @transform_4(%arg0: i32, %arg1: i32) -> (i32, i32) {
    %c0_i32 = arith.constant 0 : i32
    return %arg0, %arg1 : i32, i32
  }
}

</mosaic_0001>

<llo_original>
// kernel: tpu_custom_call.1
$region0: #{tpu_custom_call.1}
  #allocation0 [shape = 'u32[]', space=smem, size = 0x4, offset = 0x4, fixed_abs, tag = 'smem constant byte address 0x4 - core index']
  #allocation1 [shape = 'u32[72,128]{1,0:T(1,128)}', space=vmem, size = 0x9000, scoped, tag = 'internal scratch']
  %s0 = inlined_call_operand.hbm [shape: f32[3], index: 0, kind: input, shape index: {}]
  %s1 = inlined_call_operand.hbm [shape: bf16[16,384], index: 1, kind: input, shape index: {}]
  %s2 = inlined_call_operand.hbm [shape: bf16[16,256], index: 2, kind: input, shape index: {}]
  %s3 = inlined_call_operand.hbm [shape: bf16[16,320], index: 3, kind: input, shape index: {}]
  %s4 = inlined_call_operand.hbm [shape: f32[16,256], index: 4, kind: output, shape index: {}]
  %s5 = sld [smem:[#allocation0]]
  $region42: #{tpu_custom_call.1} parent=0
    _
  %s7 = ssub.s32 1, %s5
  %s8 = scalar_select 0, %s7, %s5
  $region1: #{tpu_custom_call.1} parent=0
    #allocation2 [shape = 'u8[512]{0}', space=smem, size = 0x200, scoped, tag = 'input window, operand 0, single buffered']
    #allocation3 [shape = 's32[1]{0}', space=sflag, size = 0x4, scoped, tag = 'scoped memory for tpu_custom_call.1']
    #allocation4 [shape = 's32[1]{0}', space=sflag, size = 0x4, scoped, tag = 'scoped memory for tpu_custom_call.1']
    #allocation5 [shape = 's32[1]{0}', space=sflag, size = 0x4, scoped, tag = 'scoped memory for tpu_custom_call.1']
    #allocation6 [shape = 'u8[8192]{0}', space=vmem, size = 0x2000, scoped, tag = 'input window, operand 1, single buffered']
    #allocation7 [shape = 'u8[8192]{0}', space=vmem, size = 0x2000, scoped, tag = 'input window, operand 2, single buffered']
    #allocation8 [shape = 's32[1]{0}', space=sflag, size = 0x4, scoped, tag = 'scoped memory for tpu_custom_call.1']
    #allocation9 [shape = 'u8[8192]{0}', space=vmem, size = 0x2000, scoped, tag = 'input window, operand 3, single buffered']
    #allocation10 [shape = 'u8[16384]{0}', space=vmem, size = 0x4000, scoped, tag = 'output window, operand 0, single buffered']
    %9 = vsyncpa [#allocation5], 0
    %10 = vsyncpa [#allocation3], 0
    %11 = vsyncpa [#allocation8], 0
    %12 = vsyncpa [#allocation4], 0
    // Predicated region
    $region2: #{tpu_custom_call.1} parent=1 // pred_check
      _
    $region3: #{tpu_custom_call.1} parent=1 // pred_check_branch
      %14 = sbr.rel (0) target = $region5
    $region4: #{tpu_custom_call.1} parent=1 // pred_region
      %16 = vsyncadd [#allocation5], 0
      %s18 = sshll.u32 %s0, 4
      %s19 = int_to_ptr.hbm [resolvable:$true] %s18
      %21 = dma.hbm_to_smem %s19, 16, [#allocation2], [#allocation5]
    $region5: #{tpu_custom_call.1} parent=1 // pred_fallthru
      _
    // Predicated region
    $region6: #{tpu_custom_call.1} parent=1 // pred_check
      _
    $region7: #{tpu_custom_call.1} parent=1 // pred_check_branch
      %23 = sbr.rel (0) target = $region9
    $region8: #{tpu_custom_call.1} parent=1 // pred_region
      %25 = vsyncadd [#allocation3], 0
      %s26 = sshll.u32 %s1, 4
      %s27 = int_to_ptr.hbm [resolvable:$true] %s26
      %s28 = sshll.u32 [#allocation6], 4
      %s29 = int_to_ptr.vmem [resolvable:$true] %s28
      %34 = dma.hbm_to_vmem [thread:$0]  %s27, 256, %s29, [#allocation3], 192, 128, 8
    $region9: #{tpu_custom_call.1} parent=1 // pred_fallthru
      _
    // Predicated region
    $region10: #{tpu_custom_call.1} parent=1 // pred_check
      _
    $region11: #{tpu_custom_call.1} parent=1 // pred_check_branch
      %36 = sbr.rel (0) target = $region13
    $region12: #{tpu_custom_call.1} parent=1 // pred_region
      %38 = vsyncadd [#allocation8], 0
      %s39 = sshll.u32 %s2, 4
      %s40 = int_to_ptr.hbm [resolvable:$true] %s39
      %s41 = sshll.u32 [#allocation7], 4
      %s42 = int_to_ptr.vmem [resolvable:$true] %s41
      %47 = dma.hbm_to_vmem [thread:$0]  %s40, 256, %s42, [#allocation8], 128, 128, 8
    $region13: #{tpu_custom_call.1} parent=1 // pred_fallthru
      _
    // Predicated region
    $region14: #{tpu_custom_call.1} parent=1 // pred_check
      _
    $region15: #{tpu_custom_call.1} parent=1 // pred_check_branch
      %49 = sbr.rel (0) target = $region17
    $region16: #{tpu_custom_call.1} parent=1 // pred_region
      %51 = vsyncadd [#allocation8], 0
      %s52 = sshll.u32 %s3, 4
      %s53 = int_to_ptr.hbm [resolvable:$true] %s52
      %s54 = sshll.u32 [#allocation9], 4
      %s55 = int_to_ptr.vmem [resolvable:$true] %s54
      %60 = dma.hbm_to_vmem [thread:$0]  %s53, 256, %s55, [#allocation8], 192, 128, 8
    $region17: #{tpu_custom_call.1} parent=1 // pred_fallthru
      _
    // Predicated region
    $region18: #{tpu_custom_call.1} parent=1 // pred_check
      _
    $region19: #{tpu_custom_call.1} parent=1 // pred_check_branch
      %62 = sbr.rel (0) target = $region21
    $region20: #{tpu_custom_call.1} parent=1 // pred_region
      %64 = dma.done [#allocation5], 16
    $region21: #{tpu_custom_call.1} parent=1 // pred_fallthru
      _
    // Predicated region
    $region22: #{tpu_custom_call.1} parent=1 // pred_check
      _
    $region23: #{tpu_custom_call.1} parent=1 // pred_check_branch
      %66 = sbr.rel (0) target = $region25
    $region24: #{tpu_custom_call.1} parent=1 // pred_region
      %68 = dma.done [#allocation3], 256
    $region25: #{tpu_custom_call.1} parent=1 // pred_fallthru
      _
    // Predicated region
    $region26: #{tpu_custom_call.1} parent=1 // pred_check
      _
    $region27: #{tpu_custom_call.1} parent=1 // pred_check_branch
      %70 = sbr.rel (0) target = $region29
    $region28: #{tpu_custom_call.1} parent=1 // pred_region
      %72 = dma.done [#allocation8], 256
    $region29: #{tpu_custom_call.1} parent=1 // pred_fallthru
      _
    // Predicated region
    $region30: #{tpu_custom_call.1} parent=1 // pred_check
      _
    $region31: #{tpu_custom_call.1} parent=1 // pred_check_branch
      %74 = sbr.rel (0) target = $region33
    $region32: #{tpu_custom_call.1} parent=1 // pred_region
      %76 = dma.done [#allocation8], 256
    $region33: #{tpu_custom_call.1} parent=1 // pred_fallthru
      _
    %77 = sfence
    %v78 = vld [vmem:[#allocation6] sm:$0xff]
    %v79 = vld [vmem:[#allocation6 + $0x8] sm:$0xff]
    %v80 = vunpack.c.l.bf16 %v78
    %v81 = vunpack.c.h.bf16 %v78
    %v82 = vunpack.c.l.bf16 %v79
    %v83 = vunpack.c.h.bf16 %v79
    %s84 = sld [smem:[#allocation2]]
    %v85 = vstv %s84
    %v86 = vmul.f32 %v80, %v85
    %v87 = vmul.f32 %v81, %v85
    %v88 = vmul.f32 %v82, %v85
    %v89 = vmul.f32 %v83, %v85
    %v90 = vld [vmem:[#allocation7] sm:$0xff]
    %v91 = vld [vmem:[#allocation7 + $0x8] sm:$0xff]
    %v92 = vunpack.c.l.bf16 %v90
    %v93 = vunpack.c.h.bf16 %v90
    %v94 = vunpack.c.l.bf16 %v91
    %v95 = vunpack.c.h.bf16 %v91
    %s96 = sld [smem:[#allocation2 + $0x1]]
    %v97 = vstv %s96
    %v98 = vmul.f32 %v92, %v97
    %v99 = vmul.f32 %v93, %v97
    %v100 = vmul.f32 %v94, %v97
    %v101 = vmul.f32 %v95, %v97
    %v102 = vadd.f32 %v86, %v98
    %v103 = vadd.f32 %v87, %v99
    %v104 = vadd.f32 %v88, %v100
    %v105 = vadd.f32 %v89, %v101
    %v106 = vld [vmem:[#allocation9] sm:$0xff]
    %v107 = vld [vmem:[#allocation9 + $0x8] sm:$0xff]
    %v108 = vunpack.c.l.bf16 %v106
    %v109 = vunpack.c.h.bf16 %v106
    %v110 = vunpack.c.l.bf16 %v107
    %v111 = vunpack.c.h.bf16 %v107
    %s112 = sld [smem:[#allocation2 + $0x2]]
    %v113 = vstv %s112
    %v114 = vmul.f32 %v108, %v113
    %v115 = vmul.f32 %v109, %v113
    %v116 = vmul.f32 %v110, %v113
    %v117 = vmul.f32 %v111, %v113
    %v118 = vadd.f32 %v102, %v114
    %v119 = vadd.f32 %v103, %v115
    %v120 = vadd.f32 %v104, %v116
    %v121 = vadd.f32 %v105, %v117
    %122 = vst [vmem:[#allocation10] sm:$0xff] %v118
    %123 = vst [vmem:[#allocation10 + $0x8] sm:$0xff] %v119
    %124 = vst [vmem:[#allocation10 + $0x10] sm:$0xff] %v120
    %125 = vst [vmem:[#allocation10 + $0x18] sm:$0xff] %v121
    // Predicated region
    $region34: #{tpu_custom_call.1} parent=1 // pred_check
      _
    $region35: #{tpu_custom_call.1} parent=1 // pred_check_branch
      %127 = sbr.rel (0) target = $region37
    $region36: #{tpu_custom_call.1} parent=1 // pred_region
      %129 = vsyncadd [#allocation4], 0
      %s130 = sshll.u32 [#allocation10], 4
      %s131 = int_to_ptr.vmem [resolvable:$true] %s130
      %s132 = sshll.u32 %s4, 4
      %s133 = int_to_ptr.hbm [resolvable:$true] %s132
      %138 = dma.vmem_to_hbm [thread:$0]  %s131, 512, %s133, [#allocation4], 256, 256, 16
    $region37: #{tpu_custom_call.1} parent=1 // pred_fallthru
      _
    // Predicated region
    $region38: #{tpu_custom_call.1} parent=1 // pred_check
      _
    $region39: #{tpu_custom_call.1} parent=1 // pred_check_branch
      %140 = sbr.rel (0) target = $region41
    $region40: #{tpu_custom_call.1} parent=1 // pred_region
      %142 = dma.done [#allocation4], 512
    $region41: #{tpu_custom_call.1} parent=1 // pred_fallthru
      _
    %143 = vsyncpa [#allocation3], 1
    %144 = vsyncpa [#allocation8], 1
    %145 = vsyncpa [#allocation4], 1
    %146 = vsyncpa [#allocation5], 1

</llo_original>
